<compile_context>
chip_gen: v5e
topology: v5e:2x2
jax: 0.10.0
libtpu: 0.0.40
codegen_flags: <defaults>
</compile_context>

<pallas_src>
import functools

import jax
import jax.numpy as jnp
from jax import lax
from jax.experimental import pallas as pl
from jax.experimental.pallas import tpu as pltpu

_NEG = -1.0e30  # finite "minus infinity": keeps fully-masked tiles NaN-free


def _round_up(x, m):
    return ((x + m - 1) // m) * m


def _cbow_kernel(avg_ref, tgt_ref, wt_ref, m_ref, l_ref, t_ref, *,
                 v_valid, nv_per):
    """One (vocab-split, vocab-tile) grid step of the online-softmax CE loss."""
    TV = wt_ref.shape[0]
    c = pl.program_id(0)   # vocab split (parallel; one per TensorCore on v7x)
    v = pl.program_id(1)   # vocab tile within the split (reduction axis)

    @pl.when(v == 0)
    def _init():
        m_ref[...] = jnp.full(m_ref.shape, _NEG, jnp.float32)
        l_ref[...] = jnp.zeros(l_ref.shape, jnp.float32)
        t_ref[...] = jnp.zeros(t_ref.shape, jnp.float32)

    # (B, TV) logits for this weight tile.  W stays in the nn.Linear (V, D)
    # layout; inputs already arrive in the narrow matmul dtype; f32 accumulate.
    logits = lax.dot_general(avg_ref[...], wt_ref[...],
                             (((1,), (1,)), ((), ())),
                             preferred_element_type=jnp.float32)

    base = (c * nv_per + v) * TV
    col = lax.broadcasted_iota(jnp.int32, logits.shape, 1) + base
    logits = jnp.where(col < v_valid, logits, _NEG)   # mask padded columns

    # Online log-sum-exp.
    m_old = m_ref[...]
    m_new = jnp.maximum(m_old, jnp.max(logits, axis=1, keepdims=True))
    l_ref[...] = (l_ref[...] * jnp.exp(m_old - m_new)
                  + jnp.sum(jnp.exp(logits - m_new), axis=1, keepdims=True))
    m_ref[...] = m_new

    # Target logit: the target id hits exactly one column of one tile.
    hit = col == tgt_ref[...]
    t_ref[...] = t_ref[...] + jnp.sum(jnp.where(hit, logits, 0.0),
                                      axis=1, keepdims=True)


def cbow_softmax_loss(context_words, num_context_words, target_word,
                      emb_table, out_weight, *, v_tile=None, num_splits=1,
                      matmul_dtype=jnp.bfloat16):
    """Mean cross-entropy loss of the CBOW full-softmax model.

    `out_weight` keeps the nn.Linear layout (V, D) and is streamed through the
    kernel in `matmul_dtype` (bf16 recommended on all generations; the kernel
    is HBM-bound on this stream).  `num_splits=2` splits the vocab across the
    two v7x TensorCores.  `v_tile` defaults to a per-call auto-pick that fits a
    conservative VMEM budget valid on v5e / v6e / v7x.
    """
    B, L = context_words.shape
    V, D = emb_table.shape
    assert out_weight.shape == (V, D)

    if num_splits > 1 and B % 8 != 0:
        num_splits = 1            # (B, 1) partial-output blocks need 8 sublanes

    elt = jnp.dtype(matmul_dtype).itemsize
    if v_tile is None:
        # Budget for the double-buffered W stream: fits the default scoped
        # VMEM of v5e (with the explicit vmem_limit below) and v7x's 64 MiB.
        budget = 32 << 20
        v_tile = 128
        for cand in (4096, 2048, 1024, 512, 256, 128):
            if 2 * cand * _round_up(D, 128) * elt <= budget:
                v_tile = cand
                break
        v_tile = min(v_tile, _round_up(pl.cdiv(V, num_splits), 128))
    assert v_tile % 16 == 0, "v_tile must be a multiple of 16 (bf16 sublanes)"

    V_pad = _round_up(V, num_splits * v_tile)
    nv_per = (V_pad // v_tile) // num_splits

    # ---- masked-mean context embedding in plain JAX (keeps the (V, D)
    # embedding table out of VMEM entirely) --------------------------------
    ctx = jnp.clip(context_words.astype(jnp.int32), 0, V - 1)
    nctx = num_context_words.astype(jnp.int32).reshape(B)
    mask = (jnp.arange(L, dtype=jnp.int32)[None, :] < nctx[:, None])
    ctx_emb = jnp.take(jnp.asarray(emb_table, jnp.float32), ctx, axis=0)
    ctx_sum = jnp.sum(ctx_emb * mask[:, :, None].astype(jnp.float32), axis=1)
    denom = jnp.maximum(nctx, 1).astype(jnp.float32)[:, None]
    avg = (ctx_sum / denom).astype(matmul_dtype)                    # (B, D)

    tgt = jnp.clip(target_word.astype(jnp.int32), 0, V - 1).reshape(B, 1)

    # Stream W narrow (single wrapper-side cast, never per-tile in-kernel) and
    # pad the vocab axis so every split sees whole tiles.
    wt = jnp.asarray(out_weight, matmul_dtype)
    if V_pad != V:
        wt = jnp.pad(wt, ((0, V_pad - V), (0, 0)))

    kernel = functools.partial(_cbow_kernel, v_valid=V, nv_per=nv_per)

    # VMEM budget: double-buffered W stream + small resident blocks + headroom.
    lane_d = _round_up(D, 128)
    b8 = _round_up(B, 8)
    vmem_bytes = (2 * v_tile * lane_d * elt        # W tiles (double-buffered)
                  + 2 * b8 * lane_d * elt          # averaged context
                  + 2 * b8 * 128 * 4               # target ids
                  + 3 * 2 * b8 * 128 * 4)          # m / l / t outputs
    vmem_limit = max(4 << 20, min(int(1.5 * vmem_bytes) + (2 << 20), 64 << 20))

    grid_spec = pltpu.PrefetchScalarGridSpec(
        num_scalar_prefetch=0,
        grid=(num_splits, nv_per),
        in_specs=[
            pl.BlockSpec((B, D), lambda c, v: (0, 0)),         # avg (resident)
            pl.BlockSpec((B, 1), lambda c, v: (0, 0)),         # target ids
            pl.BlockSpec((v_tile, D),
                         lambda c, v: (c * nv_per + v, 0)),    # W (streamed)
        ],
        out_specs=[
            pl.BlockSpec((B, 1), lambda c, v: (c, 0)),         # running max
            pl.BlockSpec((B, 1), lambda c, v: (c, 0)),         # running sumexp
            pl.BlockSpec((B, 1), lambda c, v: (c, 0)),         # target logit
        ],
    )

    part = jax.ShapeDtypeStruct((num_splits * B, 1), jnp.float32)
    m_p, l_p, t_p = pl.pallas_call(
        kernel,
        grid_spec=grid_spec,
        out_shape=(part, part, part),
        compiler_params=pltpu.CompilerParams(
            dimension_semantics=("parallel", "arbitrary"),
            vmem_limit_bytes=vmem_limit),
        cost_estimate=pl.CostEstimate(
            flops=2 * B * V_pad * D,
            transcendentals=B * V_pad,
            bytes_accessed=elt * (V_pad * D + B * D) + 4 * 7 * B),
    )(avg, tgt, wt)

    # Combine per-split partial LSE statistics (num_splits*B scalars; trivial).
    m = m_p.reshape(num_splits, B)
    l = l_p.reshape(num_splits, B)
    t = t_p.reshape(num_splits, B)
    m_max = jnp.max(m, axis=0)
    l_tot = jnp.sum(jnp.exp(m - m_max[None, :]) * l, axis=0)
    lse = m_max + jnp.log(l_tot)
    return jnp.mean(lse - jnp.sum(t, axis=0))


def reference_loss(context_words, num_context_words, target_word,
                   emb_table, out_weight):
    B, L = context_words.shape
    mask = (jnp.arange(L)[None, :] < num_context_words[:, None]).astype(jnp.float32)
    ctx_emb = emb_table[context_words] * mask[:, :, None]
    ctx_sum = ctx_emb.sum(axis=1)
    valid = jnp.maximum(num_context_words, 1)[:, None].astype(jnp.float32)
    avg = ctx_sum / valid
    logits = avg @ out_weight.T
    logp = jax.nn.log_softmax(logits, axis=1)
    return -jnp.mean(logp[jnp.arange(B), target_word])


if __name__ == "__main__":
    VOCAB = 512
    DIM = 128
    B = 8
    MAX_CTX = 8
    V_SMALL = 500   # non-divisible vocab to exercise padding + column masking

    key = jax.random.PRNGKey(0)
    k_emb, k_w, k_ctx, k_n, k_tgt = jax.random.split(key, 5)

    # Deterministic parameter init (shapes per the module __init__):
    #   context_embeddings.weight ~ U(-0.5/D, 0.5/D); output_weights (V, D).
    emb_table = jax.random.uniform(
        k_emb, (VOCAB, DIM), jnp.float32, minval=-0.5 / DIM, maxval=0.5 / DIM)
    out_weight = jax.random.uniform(
        k_w, (VOCAB, DIM), jnp.float32,
        minval=-(1.0 / DIM) ** 0.5, maxval=(1.0 / DIM) ** 0.5)

    context_words = jax.random.randint(k_ctx, (B, MAX_CTX), 0, V_SMALL, jnp.int32)
    num_context_words = jax.random.randint(k_n, (B,), 1, MAX_CTX + 1, jnp.int32)
    target_word = jax.random.randint(k_tgt, (B,), 0, V_SMALL, jnp.int32)

    # ---- f32 stream, single split, divisible vocab: tight tolerance -------
    ref = reference_loss(context_words, num_context_words, target_word,
                         emb_table, out_weight)
    loss = cbow_softmax_loss(context_words, num_context_words, target_word,
                             emb_table, out_weight, v_tile=128,
                             matmul_dtype=jnp.float32)
    jax.block_until_ready(loss)
    assert jnp.allclose(loss, ref, rtol=1e-5, atol=1e-5), (loss, ref)

    # ---- bf16 stream, 2 vocab splits (v7x path), non-divisible vocab ------
    ref2 = reference_loss(context_words, num_context_words, target_word,
                          emb_table[:V_SMALL], out_weight[:V_SMALL])
    loss2 = cbow_softmax_loss(context_words, num_context_words, target_word,
                              emb_table[:V_SMALL], out_weight[:V_SMALL],
                              num_splits=2, matmul_dtype=jnp.bfloat16)
    jax.block_until_ready(loss2)
    assert jnp.allclose(loss2, ref2, rtol=3e-2, atol=3e-3), (loss2, ref2)

    print("KERNEL_OK")
</pallas_src>

<mosaic_0001>
module attributes {stable_mosaic.version = 11 : i64} {
  func.func @_cbow_kernel(%arg0: i32, %arg1: i32, %arg2: memref<8x128xf32, #tpu.memory_space<vmem>>, %arg3: memref<8x1xi32, #tpu.memory_space<vmem>>, %arg4: memref<128x128xf32, #tpu.memory_space<vmem>>, %arg5: memref<8x1xf32, #tpu.memory_space<vmem>>, %arg6: memref<8x1xf32, #tpu.memory_space<vmem>>, %arg7: memref<8x1xf32, #tpu.memory_space<vmem>>) attributes {dimension_semantics = [#tpu.dimension_semantics<parallel>, #tpu.dimension_semantics<arbitrary>], iteration_bounds = array<i64: 1, 4>, scalar_prefetch = 0 : i64, scratch_operands = 0 : i64, tpu.core_type = #tpu.core_type<tc>, window_params = [{pipeline_mode = #tpu.pipeline_mode<synchronous>, transform_indices = @transform_0, window_bounds = array<i64: 8, 128>}, {pipeline_mode = #tpu.pipeline_mode<synchronous>, transform_indices = @transform_1, window_bounds = array<i64: 8, 1>}, {transform_indices = @transform_2, window_bounds = array<i64: 128, 128>}, {transform_indices = @transform_3, window_bounds = array<i64: 8, 1>}, {transform_indices = @transform_4, window_bounds = array<i64: 8, 1>}, {transform_indices = @transform_5, window_bounds = array<i64: 8, 1>}]} {
    %c0_i32 = arith.constant 0 : i32
    %0 = arith.cmpi eq, %arg1, %c0_i32 : i32
    %1 = arith.extui %0 : i1 to i32
    %c0_i32_0 = arith.constant 0 : i32
    %2 = arith.cmpi ne, %1, %c0_i32_0 : i32
    scf.if %2 {
      %cst_23 = arith.constant -1.000000e+30 : f32
      %42 = vector.broadcast %cst_23 : f32 to vector<8x1xf32>
      %c0_24 = arith.constant 0 : index
      %c0_25 = arith.constant 0 : index
      %43 = vector.load %arg5[%c0_24, %c0_25] : memref<8x1xf32, #tpu.memory_space<vmem>>, vector<8x1xf32>
      tpu.vector_store %arg5[%c0_24, %c0_25], %42 {strides = array<i32>} : memref<8x1xf32, #tpu.memory_space<vmem>>, vector<8x1xf32>,
      %cst_26 = arith.constant 0.000000e+00 : f32
      %44 = vector.broadcast %cst_26 : f32 to vector<8x1xf32>
      %c0_27 = arith.constant 0 : index
      %c0_28 = arith.constant 0 : index
      %45 = vector.load %arg6[%c0_27, %c0_28] : memref<8x1xf32, #tpu.memory_space<vmem>>, vector<8x1xf32>
      tpu.vector_store %arg6[%c0_27, %c0_28], %44 {strides = array<i32>} : memref<8x1xf32, #tpu.memory_space<vmem>>, vector<8x1xf32>,
      %cst_29 = arith.constant 0.000000e+00 : f32
      %46 = vector.broadcast %cst_29 : f32 to vector<8x1xf32>
      %c0_30 = arith.constant 0 : index
      %c0_31 = arith.constant 0 : index
      %47 = vector.load %arg7[%c0_30, %c0_31] : memref<8x1xf32, #tpu.memory_space<vmem>>, vector<8x1xf32>
      tpu.vector_store %arg7[%c0_30, %c0_31], %46 {strides = array<i32>} : memref<8x1xf32, #tpu.memory_space<vmem>>, vector<8x1xf32>,
    } else {
    }
    %c0 = arith.constant 0 : index
    %c0_1 = arith.constant 0 : index
    %3 = vector.load %arg2[%c0, %c0_1] : memref<8x128xf32, #tpu.memory_space<vmem>>, vector<8x128xf32>
    %c0_2 = arith.constant 0 : index
    %c0_3 = arith.constant 0 : index
    %4 = vector.load %arg4[%c0_2, %c0_3] : memref<128x128xf32, #tpu.memory_space<vmem>>, vector<128x128xf32>
    %cst = arith.constant dense<0.000000e+00> : vector<8x128xf32>
    %5 = tpu.matmul %3, %4, %cst {dimension_numbers = #tpu.dot_dimension_numbers<[1], [1], [0], [0], [0, 0, 1, 0], [], []>} : vector<8x128xf32>, vector<128x128xf32>, vector<8x128xf32> -> vector<8x128xf32>
    %c4_i32 = arith.constant 4 : i32
    %6 = arith.muli %arg0, %c4_i32 : i32
    %7 = arith.addi %6, %arg1 : i32
    %c128_i32 = arith.constant 128 : i32
    %8 = arith.muli %7, %c128_i32 : i32
    %9 = tpu.iota {dimensions = array<i32: 1>} : vector<8x128xi32>
    %10 = vector.broadcast %8 : i32 to vector<8x128xi32>
    %11 = arith.addi %9, %10 : vector<8x128xi32>
    %c512_i32 = arith.constant 512 : i32
    %12 = vector.broadcast %c512_i32 : i32 to vector<8x128xi32>
    %13 = arith.cmpi slt, %11, %12 : vector<8x128xi32>
    %cst_4 = arith.constant -1.000000e+30 : f32
    %14 = vector.broadcast %cst_4 : f32 to vector<8x128xf32>
    %15 = arith.select %13, %5, %14 : vector<8x128xi1>, vector<8x128xf32>
    %c0_5 = arith.constant 0 : index
    %c0_6 = arith.constant 0 : index
    %16 = vector.load %arg5[%c0_5, %c0_6] : memref<8x1xf32, #tpu.memory_space<vmem>>, vector<8x1xf32>
    %cst_7 = arith.constant dense<0xFF800000> : vector<8xf32>
    %17 = vector.multi_reduction <maximumf>, %15, %cst_7 [1] : vector<8x128xf32> to vector<8xf32>
    %18 = vector.shape_cast %17 : vector<8xf32> to vector<8x1xf32>
    %19 = arith.maximumf %16, %18 : vector<8x1xf32>
    %c0_8 = arith.constant 0 : index
    %c0_9 = arith.constant 0 : index
    %20 = vector.load %arg6[%c0_8, %c0_9] : memref<8x1xf32, #tpu.memory_space<vmem>>, vector<8x1xf32>
    %21 = arith.subf %16, %19 : vector<8x1xf32>
    %22 = math.exp %21 : vector<8x1xf32>
    %23 = arith.mulf %20, %22 : vector<8x1xf32>
    %24 = vector.broadcast %19 : vector<8x1xf32> to vector<8x128xf32>
    %25 = arith.subf %15, %24 : vector<8x128xf32>
    %26 = math.exp %25 : vector<8x128xf32>
    %cst_10 = arith.constant dense<0.000000e+00> : vector<8xf32>
    %27 = vector.multi_reduction <add>, %26, %cst_10 [1] : vector<8x128xf32> to vector<8xf32>
    %28 = vector.shape_cast %27 : vector<8xf32> to vector<8x1xf32>
    %29 = arith.addf %23, %28 : vector<8x1xf32>
    %c0_11 = arith.constant 0 : index
    %c0_12 = arith.constant 0 : index
    %30 = vector.load %arg6[%c0_11, %c0_12] : memref<8x1xf32, #tpu.memory_space<vmem>>, vector<8x1xf32>
    tpu.vector_store %arg6[%c0_11, %c0_12], %29 {strides = array<i32>} : memref<8x1xf32, #tpu.memory_space<vmem>>, vector<8x1xf32>,
    %c0_13 = arith.constant 0 : index
    %c0_14 = arith.constant 0 : index
    %31 = vector.load %arg5[%c0_13, %c0_14] : memref<8x1xf32, #tpu.memory_space<vmem>>, vector<8x1xf32>
    tpu.vector_store %arg5[%c0_13, %c0_14], %19 {strides = array<i32>} : memref<8x1xf32, #tpu.memory_space<vmem>>, vector<8x1xf32>,
    %c0_15 = arith.constant 0 : index
    %c0_16 = arith.constant 0 : index
    %32 = vector.load %arg3[%c0_15, %c0_16] : memref<8x1xi32, #tpu.memory_space<vmem>>, vector<8x1xi32>
    %33 = vector.broadcast %32 : vector<8x1xi32> to vector<8x128xi32>
    %34 = arith.cmpi eq, %11, %33 : vector<8x128xi32>
    %c0_17 = arith.constant 0 : index
    %c0_18 = arith.constant 0 : index
    %35 = vector.load %arg7[%c0_17, %c0_18] : memref<8x1xf32, #tpu.memory_space<vmem>>, vector<8x1xf32>
    %cst_19 = arith.constant 0.000000e+00 : f32
    %36 = vector.broadcast %cst_19 : f32 to vector<8x128xf32>
    %37 = arith.select %34, %15, %36 : vector<8x128xi1>, vector<8x128xf32>
    %cst_20 = arith.constant dense<0.000000e+00> : vector<8xf32>
    %38 = vector.multi_reduction <add>, %37, %cst_20 [1] : vector<8x128xf32> to vector<8xf32>
    %39 = vector.shape_cast %38 : vector<8xf32> to vector<8x1xf32>
    %40 = arith.addf %35, %39 : vector<8x1xf32>
    %c0_21 = arith.constant 0 : index
    %c0_22 = arith.constant 0 : index
    %41 = vector.load %arg7[%c0_21, %c0_22] : memref<8x1xf32, #tpu.memory_space<vmem>>, vector<8x1xf32>
    tpu.vector_store %arg7[%c0_21, %c0_22], %40 {strides = array<i32>} : memref<8x1xf32, #tpu.memory_space<vmem>>, vector<8x1xf32>,
    return
  }
  func.func @transform_0(%arg0: i32, %arg1: i32) -> (i32, i32) {
    %c0_i32 = arith.constant 0 : i32
    %c0_i32_0 = arith.constant 0 : i32
    %c0_i32_1 = arith.constant 0 : i32
    return %c0_i32, %c0_i32_0 : i32, i32
  }
  func.func @transform_1(%arg0: i32, %arg1: i32) -> (i32, i32) {
    %c0_i32 = arith.constant 0 : i32
    %c0_i32_0 = arith.constant 0 : i32
    %c0_i32_1 = arith.constant 0 : i32
    return %c0_i32, %c0_i32_0 : i32, i32
  }
  func.func @transform_2(%arg0: i32, %arg1: i32) -> (i32, i32) {
    %c4_i32 = arith.constant 4 : i32
    %0 = arith.muli %arg0, %c4_i32 : i32
    %1 = arith.addi %0, %arg1 : i32
    %c0_i32 = arith.constant 0 : i32
    %c0_i32_0 = arith.constant 0 : i32
    return %1, %c0_i32 : i32, i32
  }
  func.func @transform_3(%arg0: i32, %arg1: i32) -> (i32, i32) {
    %c0_i32 = arith.constant 0 : i32
    %c0_i32_0 = arith.constant 0 : i32
    return %arg0, %c0_i32 : i32, i32
  }
  func.func @transform_4(%arg0: i32, %arg1: i32) -> (i32, i32) {
    %c0_i32 = arith.constant 0 : i32
    %c0_i32_0 = arith.constant 0 : i32
    return %arg0, %c0_i32 : i32, i32
  }
  func.func @transform_5(%arg0: i32, %arg1: i32) -> (i32, i32) {
    %c0_i32 = arith.constant 0 : i32
    %c0_i32_0 = arith.constant 0 : i32
    return %arg0, %c0_i32 : i32, i32
  }
}

</mosaic_0001>

<llo_original>
// kernel: tpu_custom_call.1
$region0: #{tpu_custom_call.1}
  #allocation0 [shape = 'u32[]', space=smem, size = 0x4, offset = 0x4, fixed_abs, tag = 'smem constant byte address 0x4 - core index']
  #allocation1 [shape = 'u32[72,128]{1,0:T(1,128)}', space=vmem, size = 0x9000, scoped, tag = 'internal scratch']
  %s0 = inlined_call_operand.vmem [shape: f32[8,128], index: 0, kind: input, shape index: {}]
  %s1 = inlined_call_operand.vmem [shape: s32[8,1], index: 1, kind: input, shape index: {}]
  %s2 = inlined_call_operand.hbm [shape: f32[512,128], index: 2, kind: input, shape index: {}]
  %s3 = inlined_call_operand.vmem [shape: f32[8,1], index: 3, kind: output, shape index: {0}]
  %s4 = inlined_call_operand.vmem [shape: f32[8,1], index: 4, kind: output, shape index: {1}]
  %s5 = inlined_call_operand.vmem [shape: f32[8,1], index: 5, kind: output, shape index: {2}]
  %6 = xla_tuple %s3, %s4, %s5
  %s7 = sld [smem:[#allocation0]]
  $region69: #{tpu_custom_call.1} parent=0
    _
  %s9 = ssub.s32 1, %s7
  %s10 = scalar_select 0, %s9, %s7
  $region1: #{tpu_custom_call.1} parent=0
    #allocation2 [shape = 'u8[131072]{0}', space=vmem, size = 0x20000, scoped, tag = 'input window, operand 2']
    #allocation3 [shape = 's32[2]{0}', space=sflag, size = 0x8, scoped, tag = 'scoped memory for tpu_custom_call.1']
    %11 = vsyncpa [#allocation3], 0
    %s12 = scalar_lea.sflag [#allocation3], 1
    %13 = vsyncpa %s12, 0
    loop: start=0, step=1, limit=6
    $region2: #{tpu_custom_call.1} parent=1 // loop_pre_header
      _
    $region3: #{tpu_custom_call.1} parent=1 // loop_header
      %s15 = sphi 0, %s19
      %p16 = scmp.ge.s32.totalorder %s15, 6
      %s22 = sphi 0, %s34
      %s23 = sphi 0, %s30
      %s24 = sphi 0, %s22
      %s25 = sphi 0, %s23
      %s26 = sphi 0, %s24
      %s27 = sphi 0, %s25
      %s35 = sphi 0, %s35
      %s37 = sphi 0, %s35
      %s38 = sphi 0, %s37
      %s52 = sphi 0, %s38
      %s56 = sphi 0, %s56
      %s58 = sphi 0, %s56
      %s59 = sphi 0, %s58
      %s73 = sphi 0, %s59
      %s83 = sphi 0, %s85
      %s86 = sphi 0, %s83
      %s87 = sphi 0, %s86
      %s103 = sphi 0, %s87
      %s109 = sphi 0, %s111
      %s112 = sphi 0, %s109
      %s113 = sphi 0, %s112
      %s129 = sphi 0, %s113
      %s135 = sphi 0, %s137
      %s138 = sphi 0, %s135
      %s139 = sphi 0, %s138
      %s155 = sphi 0, %s139
      %s161 = sphi 0, %s163
      %s164 = sphi 0, %s161
      %s165 = sphi 0, %s164
      %s181 = sphi 0, %s165
    $region4: #{tpu_custom_call.1} parent=1 // loop_header_branch
      %18 = sbr.rel (%p16) target = $region8
    $region5: #{tpu_custom_call.1} parent=1 // loop_body
      %s20 = ssub.s32 %s15, 1
      %s21 = ssub.s32 %s15, 2
      %s28 = sadd.s32 1, %s23
      %p29 = scmp.ge.s32.totalorder %s28, 4
      %s30 = scalar_select %p29, 0, %s28
      %s31 = sadd.s32 1, %s22
      %s32 = scalar_select %p29, %s31, %s22
      %p33 = scmp.ge.s32.totalorder %s32, 1
      %s34 = scalar_select %p33, 0, %s32
      %s36 = sadd.s32 %s35, 1
      %p39 = scmp.eq.s32.totalorder %s15, 3
      %p40 = scmp.ne.s32.totalorder %s35, %s37
      %p41 = scmp.eq.s32.totalorder %s15, 0
      %p42 = por %p40, %p41
      %p43 = scmp.ne.s32.totalorder %s35, %s37
      %p44 = scmp.eq.s32.totalorder %s20, 3
      %p45 = por %p43, %p44
      %p46 = scmp.ne.s32.totalorder %s37, %s38
      %p47 = scmp.eq.s32.totalorder %s20, 0
      %p48 = por %p46, %p47
      %p49 = scmp.ne.s32.totalorder %s37, %s38
      %p50 = scmp.eq.s32.totalorder %s21, 3
      %p51 = por %p49, %p50
      %p53 = scmp.ne.s32.totalorder %s38, %s52
      %p54 = scmp.eq.s32.totalorder %s21, 0
      %p55 = por %p53, %p54
      %s57 = sadd.s32 %s56, 1
      %p60 = scmp.eq.s32.totalorder %s15, 3
      %p61 = scmp.ne.s32.totalorder %s56, %s58
      %p62 = scmp.eq.s32.totalorder %s15, 0
      %p63 = por %p61, %p62
      %p64 = scmp.ne.s32.totalorder %s56, %s58
      %p65 = scmp.eq.s32.totalorder %s20, 3
      %p66 = por %p64, %p65
      %p67 = scmp.ne.s32.totalorder %s58, %s59
      %p68 = scmp.eq.s32.totalorder %s20, 0
      %p69 = por %p67, %p68
      %p70 = scmp.ne.s32.totalorder %s58, %s59
      %p71 = scmp.eq.s32.totalorder %s21, 3
      %p72 = por %p70, %p71
      %p74 = scmp.ne.s32.totalorder %s59, %s73
      %p75 = scmp.eq.s32.totalorder %s21, 0
      %p76 = por %p74, %p75
      %s77 = smul.u32 %s22, 4
      %s78 = sadd.s32 %s77, %s23
      %s79 = smul.u32 %s34, 4
      %s80 = sadd.s32 %s79, %s30
      %s81 = ssub.s32 %s78, %s80
      %p82 = scmp.eq.s32.totalorder %s81, 0
      %s84 = sadd.s32 %s83, 1
      %s85 = scalar_select %p82, %s83, %s84
      %p88 = pneg %p82
      %p89 = scmp.eq.s32.totalorder %s15, 3
      %p90 = por %p88, %p89
      %p91 = scmp.ne.s32.totalorder %s83, %s86
      %p92 = scmp.eq.s32.totalorder %s15, 0
      %p93 = por %p91, %p92
      %p94 = scmp.ne.s32.totalorder %s83, %s86
      %p95 = scmp.eq.s32.totalorder %s20, 3
      %p96 = por %p94, %p95
      %p97 = scmp.ne.s32.totalorder %s86, %s87
      %p98 = scmp.eq.s32.totalorder %s20, 0
      %p99 = por %p97, %p98
      %p100 = scmp.ne.s32.totalorder %s86, %s87
      %p101 = scmp.eq.s32.totalorder %s21, 3
      %p102 = por %p100, %p101
      %p104 = scmp.ne.s32.totalorder %s87, %s103
      %p105 = scmp.eq.s32.totalorder %s21, 0
      %p106 = por %p104, %p105
      %s107 = ssub.s32 %s22, %s34
      %p108 = scmp.eq.s32.totalorder %s107, 0
      %s110 = sadd.s32 %s109, 1
      %s111 = scalar_select %p108, %s109, %s110
      %p114 = pneg %p108
      %p115 = scmp.eq.s32.totalorder %s15, 3
      %p116 = por %p114, %p115
      %p117 = scmp.ne.s32.totalorder %s109, %s112
      %p118 = scmp.eq.s32.totalorder %s15, 0
      %p119 = por %p117, %p118
      %p120 = scmp.ne.s32.totalorder %s109, %s112
      %p121 = scmp.eq.s32.totalorder %s20, 3
      %p122 = por %p120, %p121
      %p123 = scmp.ne.s32.totalorder %s112, %s113
      %p124 = scmp.eq.s32.totalorder %s20, 0
      %p125 = por %p123, %p124
      %p126 = scmp.ne.s32.totalorder %s112, %s113
      %p127 = scmp.eq.s32.totalorder %s21, 3
      %p128 = por %p126, %p127
      %p130 = scmp.ne.s32.totalorder %s113, %s129
      %p131 = scmp.eq.s32.totalorder %s21, 0
      %p132 = por %p130, %p131
      %s133 = ssub.s32 %s22, %s34
      %p134 = scmp.eq.s32.totalorder %s133, 0
      %s136 = sadd.s32 %s135, 1
      %s137 = scalar_select %p134, %s135, %s136
      %p140 = pneg %p134
      %p141 = scmp.eq.s32.totalorder %s15, 3
      %p142 = por %p140, %p141
      %p143 = scmp.ne.s32.totalorder %s135, %s138
      %p144 = scmp.eq.s32.totalorder %s15, 0
      %p145 = por %p143, %p144
      %p146 = scmp.ne.s32.totalorder %s135, %s138
      %p147 = scmp.eq.s32.totalorder %s20, 3
      %p148 = por %p146, %p147
      %p149 = scmp.ne.s32.totalorder %s138, %s139
      %p150 = scmp.eq.s32.totalorder %s20, 0
      %p151 = por %p149, %p150
      %p152 = scmp.ne.s32.totalorder %s138, %s139
      %p153 = scmp.eq.s32.totalorder %s21, 3
      %p154 = por %p152, %p153
      %p156 = scmp.ne.s32.totalorder %s139, %s155
      %p157 = scmp.eq.s32.totalorder %s21, 0
      %p158 = por %p156, %p157
      %s159 = ssub.s32 %s22, %s34
      %p160 = scmp.eq.s32.totalorder %s159, 0
      %s162 = sadd.s32 %s161, 1
      %s163 = scalar_select %p160, %s161, %s162
      %p166 = pneg %p160
      %p167 = scmp.eq.s32.totalorder %s15, 3
      %p168 = por %p166, %p167
      %p169 = scmp.ne.s32.totalorder %s161, %s164
      %p170 = scmp.eq.s32.totalorder %s15, 0
      %p171 = por %p169, %p170
      %p172 = scmp.ne.s32.totalorder %s161, %s164
      %p173 = scmp.eq.s32.totalorder %s20, 3
      %p174 = por %p172, %p173
      %p175 = scmp.ne.s32.totalorder %s164, %s165
      %p176 = scmp.eq.s32.totalorder %s20, 0
      %p177 = por %p175, %p176
      %p178 = scmp.ne.s32.totalorder %s164, %s165
      %p179 = scmp.eq.s32.totalorder %s21, 3
      %p180 = por %p178, %p179
      %p182 = scmp.ne.s32.totalorder %s165, %s181
      %p183 = scmp.eq.s32.totalorder %s21, 0
      %p184 = por %p182, %p183
      %p185 = scmp.le.s32.totalorder 1, %s15
      %p186 = scmp.lt.s32.totalorder %s15, 5
      %p187 = pnand %p185, %p186
      %p188 = pneg %p187
      // Predicated region
      $region9: #{tpu_custom_call.1} parent=5 // pred_check
        _
      $region10: #{tpu_custom_call.1} parent=5 // pred_check_branch
        %190 = sbr.rel (%p187) target = $region12
      $region11: #{tpu_custom_call.1} parent=5 // pred_region
        %s191 = ssub.s32 %s15, 1
        // Predicated region
        $region13: #{tpu_custom_call.1} parent=11 // pred_check
          %p192 = pneg %p48
        $region14: #{tpu_custom_call.1} parent=11 // pred_check_branch
          %194 = sbr.rel (%p192) target = $region16
        $region15: #{tpu_custom_call.1} parent=11 // pred_region
          _
        $region16: #{tpu_custom_call.1} parent=11 // pred_fallthru
          _
        // Predicated region
        $region17: #{tpu_custom_call.1} parent=11 // pred_check
          %p195 = pneg %p69
        $region18: #{tpu_custom_call.1} parent=11 // pred_check_branch
          %197 = sbr.rel (%p195) target = $region20
        $region19: #{tpu_custom_call.1} parent=11 // pred_region
          _
        $region20: #{tpu_custom_call.1} parent=11 // pred_fallthru
          _
      $region12: #{tpu_custom_call.1} parent=5 // pred_fallthru
        _
      %p198 = scmp.lt.s32.totalorder %s15, 4
      // Predicated region
      $region21: #{tpu_custom_call.1} parent=5 // pred_check
        %p199 = pneg %p198
      $region22: #{tpu_custom_call.1} parent=5 // pred_check_branch
        %201 = sbr.rel (%p199) target = $region24
      $region23: #{tpu_custom_call.1} parent=5 // pred_region
        // Predicated region
        $region25: #{tpu_custom_call.1} parent=23 // pred_check
          %p202 = pneg %p93
        $region26: #{tpu_custom_call.1} parent=23 // pred_check_branch
          %204 = sbr.rel (%p202) target = $region28
        $region27: #{tpu_custom_call.1} parent=23 // pred_region
          %s205 = sand.u32 %s83, 1
          %s206 = scalar_lea.sflag [#allocation3], %s205
          %s207 = sand.u32 %s83, 1
          %s208 = smul.addr %s207, 128
          %s209 = scalar_lea.vmem [#allocation2], %s208
          %s210 = smul.u32 %s22, 4
          %s211 = sadd.s32 %s210, %s23
          %s212 = smul.u32 16, %s211
          %214 = vsyncadd %s206, 0
          %s215 = smul.addr %s212, 8
          %s216 = scalar_lea.hbm %s2, %s215
          %s217 = sshll.u32 %s216, 4
          %s218 = int_to_ptr.hbm [resolvable:$true] %s217
          %s219 = sshll.u32 %s209, 4
          %s220 = int_to_ptr.vmem [resolvable:$true] %s219
          %225 = dma.hbm_to_vmem [thread:$0]  %s218, 2048, %s220, %s206, 128, 128, 8
        $region28: #{tpu_custom_call.1} parent=23 // pred_fallthru
          _
      $region24: #{tpu_custom_call.1} parent=5 // pred_fallthru
        _
      %p226 = scmp.le.s32.totalorder 1, %s15
      %p227 = scmp.lt.s32.totalorder %s15, 5
      %p228 = pnand %p226, %p227
      %p229 = pneg %p228
      // Predicated region
      $region29: #{tpu_custom_call.1} parent=5 // pred_check
        _
      $region30: #{tpu_custom_call.1} parent=5 // pred_check_branch
        %231 = sbr.rel (%p228) target = $region32
      $region31: #{tpu_custom_call.1} parent=5 // pred_region
        %s232 = ssub.s32 %s15, 1
        %s233 = sand.u32 %s86, 1
        %s234 = scalar_lea.sflag [#allocation3], %s233
        %s235 = sand.u32 %s86, 1
        %s236 = smul.addr %s235, 128
        %s237 = scalar_lea.vmem [#allocation2], %s236
        // Predicated region
        $region33: #{tpu_custom_call.1} parent=31 // pred_check
          %p238 = pneg %p99
        $region34: #{tpu_custom_call.1} parent=31 // pred_check_branch
          %240 = sbr.rel (%p238) target = $region36
        $region35: #{tpu_custom_call.1} parent=31 // pred_region
          %242 = dma.done %s234, 2048
        $region36: #{tpu_custom_call.1} parent=31 // pred_fallthru
          _
        %p243 = pneg %p48
        %p244 = pneg %p45
        %p245 = pneg %p69
        %p246 = pneg %p66
        %s247 = sand.u32 %s86, 1
        %s248 = scalar_lea.sflag [#allocation3], %s247
        %s249 = sand.u32 %s86, 1
        %s250 = smul.addr %s249, 128
        %s251 = scalar_lea.vmem [#allocation2], %s250
        %p252 = pneg %p99
        %p253 = pneg %p96
        %p254 = pneg %p125
        %p255 = pneg %p122
        %p256 = scmp.lt.s32.totalorder %s24, 0
        %s257 = scalar_select %p256, %s24, 0
        %s258 = smul.addr %s257, 8
        %s259 = scalar_lea.vmem %s3, %s258
        %p260 = pneg %p151
        %p261 = pneg %p148
        %p262 = scmp.lt.s32.totalorder %s24, 0
        %s263 = scalar_select %p262, %s24, 0
        %s264 = smul.addr %s263, 8
        %s265 = scalar_lea.vmem %s4, %s264
        %p266 = pneg %p177
        %p267 = pneg %p174
        %p268 = scmp.lt.s32.totalorder %s24, 0
        %s269 = scalar_select %p268, %s24, 0
        %s270 = smul.addr %s269, 8
        %s271 = scalar_lea.vmem %s5, %s270
        %s272 = smul.u32 %s24, 4
        %s273 = sadd.s32 %s272, %s25
        %s274 = smul.u32 16, %s273
        %p275 = scmp.lt.s32.totalorder %s24, 0
        %s276 = scalar_select %p275, %s24, 0
        %s277 = smul.addr %s276, 8
        %s278 = scalar_lea.vmem %s3, %s277
        %p279 = scmp.lt.s32.totalorder %s24, 0
        %s280 = scalar_select %p279, %s24, 0
        %s281 = smul.addr %s280, 8
        %s282 = scalar_lea.vmem %s4, %s281
        %p283 = scmp.lt.s32.totalorder %s24, 0
        %s284 = scalar_select %p283, %s24, 0
        %s285 = smul.addr %s284, 8
        %s286 = scalar_lea.vmem %s5, %s285
        %p287 = scmp.eq.s32.totalorder %s25, 0
        // Predicated region
        $region37: #{tpu_custom_call.1} parent=31 // pred_check
          %p288 = pneg %p287
        $region38: #{tpu_custom_call.1} parent=31 // pred_check_branch
          %290 = sbr.rel (%p288) target = $region40
        $region39: #{tpu_custom_call.1} parent=31 // pred_region
          %vm291 = vcmask 7168
          %292 = vst.msk [vmem:[%s278] sm:$0xff] %vm291, -1e+30
          %293 = vst.msk [vmem:[%s282] sm:$0xff] %vm291, 0.0
          %294 = vst.msk [vmem:[%s286] sm:$0xff] %vm291, 0.0
        $region40: #{tpu_custom_call.1} parent=31 // pred_fallthru
          _
        %v295 = vld [vmem:[%s0] sm:$0xff]
        %v296 = vld [vmem:[%s237] sm:$0xff]
        %v297 = vld [vmem:[%s237 + $0x8] sm:$0xff]
        %v298 = vld [vmem:[%s237 + $0x10] sm:$0xff]
        %v299 = vld [vmem:[%s237 + $0x18] sm:$0xff]
        %v300 = vld [vmem:[%s237 + $0x20] sm:$0xff]
        %v301 = vld [vmem:[%s237 + $0x28] sm:$0xff]
        %v302 = vld [vmem:[%s237 + $0x30] sm:$0xff]
        %v303 = vld [vmem:[%s237 + $0x38] sm:$0xff]
        %v304 = vld [vmem:[%s237 + $0x40] sm:$0xff]
        %v305 = vld [vmem:[%s237 + $0x48] sm:$0xff]
        %v306 = vld [vmem:[%s237 + $0x50] sm:$0xff]
        %v307 = vld [vmem:[%s237 + $0x58] sm:$0xff]
        %v308 = vld [vmem:[%s237 + $0x60] sm:$0xff]
        %v309 = vld [vmem:[%s237 + $0x68] sm:$0xff]
        %v310 = vld [vmem:[%s237 + $0x70] sm:$0xff]
        %v311 = vld [vmem:[%s237 + $0x78] sm:$0xff]
        %312 = vmatpush.xpose.msra.mxu0 %v311
        %313 = vmatpush.xpose.msra.mxu0 %v310
        %314 = vmatpush.xpose.msra.mxu0 %v309
        %315 = vmatpush.xpose.msra.mxu0 %v308
        %316 = vmatpush.xpose.msra.mxu0 %v307
        %317 = vmatpush.xpose.msra.mxu0 %v306
        %318 = vmatpush.xpose.msra.mxu0 %v305
        %319 = vmatpush.xpose.msra.mxu0 %v304
        %320 = vmatpush.xpose.msra.mxu0 %v303
        %321 = vmatpush.xpose.msra.mxu0 %v302
        %322 = vmatpush.xpose.msra.mxu0 %v301
        %323 = vmatpush.xpose.msra.mxu0 %v300
        %324 = vmatpush.xpose.msra.mxu0 %v299
        %325 = vmatpush.xpose.msra.mxu0 %v298
        %326 = vmatpush.xpose.msra.mxu0 %v297
        %327 = vmatpush.xpose.msra.mxu0 %v296
        %328 = vmatmul.f32.gmra.mxu0 %v295
        %v329 = vpop.f32.mrf.mxu0
        %v330 = vadd.f32 0.0, %v329
        %331 = vdwg.mxu0
        %s332 = smul.u32 %s24, 4
        %s333 = sadd.s32 %s332, %s25
        %s334 = smul.u32 %s333, 128
        %v335 = vlaneseq
        %v336 = vand.u32 %v335, 127
        %v337 = vstv %s334
        %v338 = vadd.s32 %v336, %v337
        %vm339 = vcmp.lt.s32.totalorder %v338, 512
        %v340 = vsel %vm339, %v330, -1e+30
        %v341 = vld [vmem:[%s278] sm:$0xff]
        %342 = vmax.xlane.f32.xlu0 %v340
        %v343 = vpop.xlane.xlu0 %342
        %v344 = vmax.f32 %v341, %v343
        %v345 = vld [vmem:[%s282] sm:$0xff]
        %v346 = vsub.f32 %v341, %v344
        %v347 = vmul.f32 %v346, 1.442695
        %v348 = vpow.pop %v347
        %v349 = vmul.f32 %v345, %v348
        %351 = vset.pattern.permute.xlu0 0
        %352 = vperm.xlu0 %351, %v344
        %v353 = vpop.permute.xlu0 %352
        %v355 = vsub.f32 %v340, %v353
        %v356 = vmul.f32 %v355, 1.442695
        %v357 = vpow.pop %v356
        %358 = vadd.xlane.f32.xlu0 %v357
        %v359 = vpop.xlane.xlu0 %358
        %v360 = vadd.f32 %v349, %v359
        %vm361 = vcmask 7168
        %362 = vst.msk [vmem:[%s282] sm:$0xff] %vm361, %v360
        %363 = vst.msk [vmem:[%s278] sm:$0xff] %vm361, %v344
        %v364 = vld [vmem:[%s1] sm:$0xff]
        %365 = vset.pattern.permute.xlu0 0
        %366 = vperm.xlu0 %365, %v364
        %v367 = vpop.permute.xlu0 %366
        %vm368 = vcmp.eq.s32.totalorder %v338, %v367
        %v369 = vld [vmem:[%s286] sm:$0xff]
        %v370 = vsel %vm368, %v340, 0.0
        %371 = vadd.xlane.f32.xlu0 %v370
        %v372 = vpop.xlane.xlu0 %371
        %v373 = vadd.f32 %v369, %v372
        %374 = vst.msk [vmem:[%s286] sm:$0xff] %vm361, %v373
        %p375 = scmp.lt.s32.totalorder %s24, 0
        %s376 = scalar_select %p375, %s24, 0
        %s377 = smul.addr %s376, 8
        %s378 = scalar_lea.vmem %s3, %s377
        %p379 = scmp.lt.s32.totalorder %s24, 0
        %s380 = scalar_select %p379, %s24, 0
        %s381 = smul.addr %s380, 8
        %s382 = scalar_lea.vmem %s4, %s381
        %p383 = scmp.lt.s32.totalorder %s24, 0
        %s384 = scalar_select %p383, %s24, 0
        %s385 = smul.addr %s384, 8
        %s386 = scalar_lea.vmem %s5, %s385
        // Predicated region
        $region41: #{tpu_custom_call.1} parent=31 // pred_check
          %p387 = pneg %p122
        $region42: #{tpu_custom_call.1} parent=31 // pred_check_branch
          %389 = sbr.rel (%p387) target = $region44
        $region43: #{tpu_custom_call.1} parent=31 // pred_region
          _
        $region44: #{tpu_custom_call.1} parent=31 // pred_fallthru
          _
        // Predicated region
        $region45: #{tpu_custom_call.1} parent=31 // pred_check
          %p390 = pneg %p148
        $region46: #{tpu_custom_call.1} parent=31 // pred_check_branch
          %392 = sbr.rel (%p390) target = $region48
        $region47: #{tpu_custom_call.1} parent=31 // pred_region
          _
        $region48: #{tpu_custom_call.1} parent=31 // pred_fallthru
          _
        // Predicated region
        $region49: #{tpu_custom_call.1} parent=31 // pred_check
          %p393 = pneg %p174
        $region50: #{tpu_custom_call.1} parent=31 // pred_check_branch
          %395 = sbr.rel (%p393) target = $region52
        $region51: #{tpu_custom_call.1} parent=31 // pred_region
          _
        $region52: #{tpu_custom_call.1} parent=31 // pred_fallthru
          _
        // Predicated region
        $region53: #{tpu_custom_call.1} parent=31 // pred_check
          %p396 = pneg %p122
        $region54: #{tpu_custom_call.1} parent=31 // pred_check_branch
          %398 = sbr.rel (%p396) target = $region56
        $region55: #{tpu_custom_call.1} parent=31 // pred_region
          %p399 = scmp.lt.s32.totalorder %s24, 0
          %s400 = scalar_select %p399, %s24, 0
          %s401 = smul.addr %s400, 8
          %s402 = scalar_lea.vmem %s3, %s401
        $region56: #{tpu_custom_call.1} parent=31 // pred_fallthru
          _
        // Predicated region
        $region57: #{tpu_custom_call.1} parent=31 // pred_check
          %p403 = pneg %p148
        $region58: #{tpu_custom_call.1} parent=31 // pred_check_branch
          %405 = sbr.rel (%p403) target = $region60
        $region59: #{tpu_custom_call.1} parent=31 // pred_region
          %p406 = scmp.lt.s32.totalorder %s24, 0
          %s407 = scalar_select %p406, %s24, 0
          %s408 = smul.addr %s407, 8
          %s409 = scalar_lea.vmem %s4, %s408
        $region60: #{tpu_custom_call.1} parent=31 // pred_fallthru
          _
        // Predicated region
        $region61: #{tpu_custom_call.1} parent=31 // pred_check
          %p410 = pneg %p174
        $region62: #{tpu_custom_call.1} parent=31 // pred_check_branch
          %412 = sbr.rel (%p410) target = $region64
        $region63: #{tpu_custom_call.1} parent=31 // pred_region
          %p413 = scmp.lt.s32.totalorder %s24, 0
          %s414 = scalar_select %p413, %s24, 0
          %s415 = smul.addr %s414, 8
          %s416 = scalar_lea.vmem %s5, %s415
        $region64: #{tpu_custom_call.1} parent=31 // pred_fallthru
          _
      $region32: #{tpu_custom_call.1} parent=5 // pred_fallthru
        _
      %p417 = scmp.le.s32.totalorder 2, %s15
      // Predicated region
      $region65: #{tpu_custom_call.1} parent=5 // pred_check
        %p418 = pneg %p417
      $region66: #{tpu_custom_call.1} parent=5 // pred_check_branch
        %420 = sbr.rel (%p418) target = $region68
      $region67: #{tpu_custom_call.1} parent=5 // pred_region
        %s421 = ssub.s32 %s15, 2
      $region68: #{tpu_custom_call.1} parent=5 // pred_fallthru
        _
    $region6: #{tpu_custom_call.1} parent=1 // loop_footer
      %s19 = sadd.s32 1, %s15
    $region7: #{tpu_custom_call.1} parent=1 // loop_footer_branch
      %14 = sbr.rel target = $region3
    $region8: #{tpu_custom_call.1} parent=1 // loop_exit
      _
    %422 = vsyncpa [#allocation3], 1
    %s423 = scalar_lea.sflag [#allocation3], 1
    %424 = vsyncpa %s423, 1

</llo_original>
